<compile_context>
chip_gen: v7x
topology: tpu7x:2x2x1
jax: 0.10.0
libtpu: 0.0.40
codegen_flags: <defaults>
</compile_context>

<pallas_src>
import numpy as np

import jax
import jax.numpy as jnp
from jax.experimental import pallas as pl
from jax.experimental.pallas import tpu as pltpu


def _identity_kernel(x_ref, o_ref):
    # Forward pass of FakeNet: return x unchanged.
    o_ref[...] = x_ref[...]


# Lane-dense tiling parameters for the large-input path.
_LANES = 128
_ROWS_PER_TILE = 1024            # 1024 x 128 f32 = 512 KiB/tile; in+out double-
                                 # buffered = ~2 MiB, safe on v5e/v6e/v7x VMEM.
_LARGE_THRESHOLD = _ROWS_PER_TILE * _LANES


def _forward_small(x: jax.Array) -> jax.Array:
    # Whole array as a single VMEM block (block == full array satisfies the
    # (8,128) rule).  Output aliases the input buffer: no extra HBM buffer.
    return pl.pallas_call(
        _identity_kernel,
        out_shape=jax.ShapeDtypeStruct(x.shape, x.dtype),
        in_specs=[pl.BlockSpec(memory_space=pltpu.MemorySpace.VMEM)],
        out_specs=pl.BlockSpec(memory_space=pltpu.MemorySpace.VMEM),
        input_output_aliases={0: 0},
    )(x)


def _forward_tiled(x: jax.Array) -> jax.Array:
    # Lane-dense layout: flatten to (rows, 128) so stores are full-width vst
    # instead of masked partial stores, then tile rows for pipelining.
    orig_shape = x.shape
    x2 = x.reshape(-1, _LANES)
    n_rows = x2.shape[0]
    grid = (pl.cdiv(n_rows, _ROWS_PER_TILE),)
    y2 = pl.pallas_call(
        _identity_kernel,
        out_shape=jax.ShapeDtypeStruct(x2.shape, x2.dtype),
        grid=grid,
        in_specs=[pl.BlockSpec((_ROWS_PER_TILE, _LANES), lambda i: (i, 0))],
        out_specs=pl.BlockSpec((_ROWS_PER_TILE, _LANES), lambda i: (i, 0)),
        input_output_aliases={0: 0},
        compiler_params=pltpu.CompilerParams(
            dimension_semantics=("parallel",),        # megacore sharding on v7x
            vmem_limit_bytes=32 * 1024 * 1024,        # well within v7x 64 MiB
        ),
    )(x2)
    return y2.reshape(orig_shape)


def _fakenet_forward_impl(x: jax.Array) -> jax.Array:
    # Shape is static under jit, so this Python branch resolves at trace time.
    if x.size >= _LARGE_THRESHOLD and x.size % _LANES == 0:
        return _forward_tiled(x)
    return _forward_small(x)


# jit once; donate the input so the in/out aliasing is realized in place
# (callers must not reuse x after calling this).
fakenet_forward = jax.jit(_fakenet_forward_impl, donate_argnums=0)


def init_fakenet_params(key: jax.Array):
    """Deterministic init of the (unused) Linear(10, 1) parameters.

    Mirrors torch.nn.Linear(10, 1): weight (1, 10), bias (1,), uniform in
    [-1/sqrt(10), 1/sqrt(10)].  These params are NOT used in forward().
    """
    k_w, k_b = jax.random.split(key)
    bound = 1.0 / jnp.sqrt(10.0)
    weight = jax.random.uniform(k_w, (1, 10), jnp.float32, -bound, bound)
    bias = jax.random.uniform(k_b, (1,), jnp.float32, -bound, bound)
    return {"hidden": {"weight": weight, "bias": bias}}


if __name__ == "__main__":
    key = jax.random.PRNGKey(0)
    k_params, k_x = jax.random.split(key)

    # Parameters exist per __init__ but are unused by forward() (identity).
    # Hoisted out of the hot path.
    params = init_fakenet_params(k_params)

    # Small input consistent with the module: batch=2, features=10.
    x = jax.random.normal(k_x, (2, 10), dtype=jnp.float32)

    # x is donated by fakenet_forward, so snapshot it on the host first.
    x_host = np.asarray(x)

    y = fakenet_forward(x)
    y = jax.block_until_ready(y)

    # Correctness: forward is the identity.
    assert y.shape == x_host.shape and y.dtype == x_host.dtype
    assert np.array_equal(np.asarray(y), x_host)

    print("KERNEL_OK")
</pallas_src>

<mosaic_0001>
module attributes {stable_mosaic.version = 11 : i64} {
  func.func @_identity_kernel(%arg0: memref<2x10xf32, #tpu.memory_space<vmem>>, %arg1: memref<2x10xf32, #tpu.memory_space<vmem>>) attributes {dimension_semantics = [], scalar_prefetch = 0 : i64, scratch_operands = 0 : i64, tpu.core_type = #tpu.core_type<tc>} {
    %c0 = arith.constant 0 : index
    %c0_0 = arith.constant 0 : index
    %0 = vector.load %arg0[%c0, %c0_0] : memref<2x10xf32, #tpu.memory_space<vmem>>, vector<2x10xf32>
    %c0_1 = arith.constant 0 : index
    %c0_2 = arith.constant 0 : index
    %1 = vector.load %arg1[%c0_1, %c0_2] : memref<2x10xf32, #tpu.memory_space<vmem>>, vector<2x10xf32>
    tpu.vector_store %arg1[%c0_1, %c0_2], %0 {strides = array<i32>} : memref<2x10xf32, #tpu.memory_space<vmem>>, vector<2x10xf32>,
    return
  }
}

</mosaic_0001>

<llo_original>
// kernel: _fakenet_forward_impl.1
$region0: #{_fakenet_forward_impl.1}
  #allocation0 [shape = 'u32[]', space=smem, size = 0x4, offset = 0x4, fixed_abs, tag = 'smem constant byte address 0x4 - core index']
  #allocation1 [shape = 'u32[144,128]{1,0:T(1,128)}', space=vmem, size = 0x12000, scoped, tag = 'internal scratch']
  %s0 = inlined_call_operand.hbm [shape: f32[2,10], index: 0, kind: input, shape index: {}, may-alias: {0,1}]
  %s1 = inlined_call_operand.hbm [shape: f32[2,10], index: 1, kind: output, shape index: {}, may-alias: {0,1}]
  %s2 = sld [smem:[#allocation0]]
  $region18: #{_fakenet_forward_impl.1} parent=0
    _
  %s4 = ssub.s32 1, %s2
  %s5 = scalar_select 0, %s4, %s2
  $region1: #{_fakenet_forward_impl.1} parent=0
    #allocation2 [shape = 'u8[1024]{0}', space=vmem, size = 0x400, scoped, tag = 'input window, operand 0, single buffered']
    #allocation3 [shape = 's32[1]{0}', space=sflag, size = 0x4, scoped, tag = 'scoped memory for _fakenet_forward_impl.1']
    #allocation4 [shape = 's32[1]{0}', space=sflag, size = 0x4, scoped, tag = 'scoped memory for _fakenet_forward_impl.1']
    #allocation5 [shape = 'u8[1024]{0}', space=vmem, size = 0x400, scoped, tag = 'output window, operand 0, single buffered']
    %6 = vsyncpa [#allocation3], 0
    %7 = vsyncpa [#allocation4], 0
    // Predicated region
    $region2: #{_fakenet_forward_impl.1} parent=1 // pred_check
      _
    $region3: #{_fakenet_forward_impl.1} parent=1 // pred_check_branch
      %9 = sbr.rel (0) target = $region5
    $region4: #{_fakenet_forward_impl.1} parent=1 // pred_region
      %s11 = ssub.s32 32, 32
      %12 = vsyncadd [#allocation3], %s11
      %s14 = sshll.u32 [#allocation2], 4
      %s15 = int_to_ptr.vmem [resolvable:$true] %s14
      %17 = dma.hbm_to_vmem [thread:$0]  %s0, 32, %s15, [#allocation3]
    $region5: #{_fakenet_forward_impl.1} parent=1 // pred_fallthru
      _
    // Predicated region
    $region6: #{_fakenet_forward_impl.1} parent=1 // pred_check
      _
    $region7: #{_fakenet_forward_impl.1} parent=1 // pred_check_branch
      %19 = sbr.rel (0) target = $region9
    $region8: #{_fakenet_forward_impl.1} parent=1 // pred_region
      %20 = dma.done [#allocation3], 32
    $region9: #{_fakenet_forward_impl.1} parent=1 // pred_fallthru
      _
    %v21 = vld [vmem:[#allocation2] sm:$0x3]
    %vm22 = vcmask 74752
    %23 = vst.msk [vmem:[#allocation5] sm:$0x3] %vm22, %v21
    // Predicated region
    $region10: #{_fakenet_forward_impl.1} parent=1 // pred_check
      _
    $region11: #{_fakenet_forward_impl.1} parent=1 // pred_check_branch
      %25 = sbr.rel (0) target = $region13
    $region12: #{_fakenet_forward_impl.1} parent=1 // pred_region
      %s27 = ssub.s32 32, 32
      %28 = vsyncadd [#allocation4], %s27
      %s30 = sshll.u32 [#allocation5], 4
      %s31 = int_to_ptr.vmem [resolvable:$true] %s30
      %33 = dma.vmem_to_hbm [thread:$0]  %s31, 32, %s1, [#allocation4]
    $region13: #{_fakenet_forward_impl.1} parent=1 // pred_fallthru
      _
    // Predicated region
    $region14: #{_fakenet_forward_impl.1} parent=1 // pred_check
      _
    $region15: #{_fakenet_forward_impl.1} parent=1 // pred_check_branch
      %35 = sbr.rel (0) target = $region17
    $region16: #{_fakenet_forward_impl.1} parent=1 // pred_region
      %36 = dma.done [#allocation4], 32
    $region17: #{_fakenet_forward_impl.1} parent=1 // pred_fallthru
      _
    %37 = vsyncpa [#allocation3], 1
    %38 = vsyncpa [#allocation4], 1

</llo_original>
